<compile_context>
chip_gen: v7x
topology: tpu7x:2x2x1
jax: 0.10.0
libtpu: 0.0.40
codegen_flags: <defaults>
</compile_context>

<pallas_src>
import jax
import jax.numpy as jnp
from jax.experimental import pallas as pl
from jax.experimental.pallas import tpu as pltpu

_LANE = 128                               # vreg lane width
_TARGET_BLOCK_BYTES = 8 * 1024 * 1024     # ~8 MiB/block; in+out double-buffered
                                          # = 32 MiB, under the explicit limit.
_VMEM_LIMIT_BYTES = 48 * 1024 * 1024      # explicit scoped-VMEM limit: fits the
                                          # 64 MiB/TC v7x budget with headroom,
                                          # and is far below v5e/v6e's 128 MiB.
_WIDTH_CANDIDATES = (4096, 2048, 1024, 512, 256, 128)


def _copy_kernel(x_ref, o_ref):
    # Pure data movement: one lane-dense block per grid step.
    o_ref[...] = x_ref[...]


def _min_sublane(dtype):
    # dtype-aware minimum sublane tile: f32 -> 8, bf16/f16 -> 16, int8/fp8 -> 32.
    itemsize = jnp.dtype(dtype).itemsize
    return max(8, 32 // max(itemsize, 1))


def _resolve_shape(shape, total):
    """torch.view semantics: exact element count, at most one -1."""
    shape = list(shape)
    if shape.count(-1) > 1:
        raise ValueError("view(): only one dimension can be inferred (-1)")
    if -1 in shape:
        known = 1
        for s in shape:
            if s != -1:
                known *= s
        if known == 0 or total % known != 0:
            raise ValueError("view(): shape is incompatible with input size")
        shape[shape.index(-1)] = total // known
    tgt = 1
    for s in shape:
        tgt *= s
    if tgt != total:
        raise ValueError("view(): shape is incompatible with input size")
    return tuple(shape)


def _pallas_copy_2d(flat2d, rows, width, itemsize, sub_min, donate):
    """Streaming lane-dense copy of a (rows, width) slab."""
    # Big, dtype-aware row blocks; ragged final block is masked by Pallas.
    if rows <= sub_min:
        block_rows = rows                                  # full extent: legal
    else:
        block_rows = _TARGET_BLOCK_BYTES // (width * itemsize)
        block_rows = max(sub_min, (block_rows // sub_min) * sub_min)
        block_rows = min(block_rows, (rows // sub_min) * sub_min)

        # Prefer an even number of grid steps so v7x's two TensorCores split
        # the "parallel" axis evenly (best effort; keeps blocks (8,128)-legal).
        nsteps = pl.cdiv(rows, block_rows)
        if nsteps % 2 == 1 and rows > sub_min:
            new_block = pl.cdiv(rows, nsteps + 1)
            new_block = max(sub_min,
                            ((new_block + sub_min - 1) // sub_min) * sub_min)
            if pl.cdiv(rows, new_block) % 2 == 0:
                block_rows = new_block

    grid = (pl.cdiv(rows, block_rows),)

    call_kwargs = {}
    if donate:
        # torch.view aliases its input; when the caller no longer needs the
        # input buffer this halves the peak HBM footprint of the copy.
        call_kwargs["input_output_aliases"] = {0: 0}

    return pl.pallas_call(
        _copy_kernel,
        out_shape=jax.ShapeDtypeStruct((rows, width), flat2d.dtype),
        grid=grid,
        in_specs=[pl.BlockSpec((block_rows, width), lambda i: (i, 0))],
        out_specs=pl.BlockSpec((block_rows, width), lambda i: (i, 0)),
        compiler_params=pltpu.CompilerParams(
            dimension_semantics=("parallel",),
            vmem_limit_bytes=_VMEM_LIMIT_BYTES),
        cost_estimate=pl.CostEstimate(
            flops=0,
            transcendentals=0,
            bytes_accessed=2 * rows * width * itemsize),
        **call_kwargs,
    )(flat2d)


def reshape_pallas(x, shape, *, copy=False, donate=False):
    """Equivalent of torch.Tensor.view(shape) for a contiguous tensor.

    copy=False (default): metadata-only reshape, matching torch.view's
    zero-cost semantics. copy=True: materialize via a Pallas streaming copy.
    """
    total = x.size
    shape = _resolve_shape(shape, total)

    # Default: a contiguous reshape is free; don't turn it into an HBM pass.
    if not copy:
        return jnp.reshape(x, shape)

    # Degenerate / ragged cases fall back to the metadata-only path.
    if total == 0 or total % _LANE != 0:
        # TODO(synk): tails narrower than one 128-lane row stay metadata-only;
        # a Pallas copy there would only add masked partial stores.
        return jnp.reshape(x, shape)

    itemsize = jnp.dtype(x.dtype).itemsize
    sub_min = _min_sublane(x.dtype)

    # Metadata-only re-view as a wide lane-dense 2-D slab: prefer the widest
    # last dim (multiple of 128) that still leaves >= sub_min rows.
    width = None
    for cand in _WIDTH_CANDIDATES:
        if total % cand == 0 and total // cand >= sub_min:
            width = cand
            break
    if width is None:
        for cand in _WIDTH_CANDIDATES:
            if total % cand == 0:
                width = cand
                break
    rows = total // width
    flat2d = jnp.reshape(x, (rows, width))

    out2d = _pallas_copy_2d(flat2d, rows, width, itemsize, sub_min, donate)

    # Final target shape is metadata-only.
    return jnp.reshape(out2d, shape)


if __name__ == "__main__":
    key = jax.random.PRNGKey(0)

    # Reshape(2, 4, 256) applied to a (2, 4, 16, 16) NCHW tensor (the spec).
    x = jax.random.normal(key, (2, 4, 16, 16), dtype=jnp.float32)
    target_shape = (2, 4, 256)

    # Default (metadata-only) path — matches torch.view's free semantics.
    y_meta = jax.block_until_ready(reshape_pallas(x, target_shape))
    ref = jnp.reshape(x, target_shape)
    assert y_meta.shape == target_shape and jnp.array_equal(y_meta, ref)

    # Explicit-copy path — exercises the Pallas streaming-copy kernel.
    y = jax.block_until_ready(reshape_pallas(x, target_shape, copy=True))
    assert y.shape == target_shape
    assert y.dtype == x.dtype
    assert jnp.array_equal(y, ref)

    # bf16 with a -1 dim (dtype-aware sublane blocking).
    xb = jax.random.normal(key, (8, 64, 128), dtype=jnp.bfloat16)
    yb = jax.block_until_ready(reshape_pallas(xb, (8, -1), copy=True))
    assert jnp.array_equal(yb, jnp.reshape(xb, (8, 64 * 128)))

    # Multi-step grid (even number of steps for v7x 2-TC balance).
    xc = jax.random.normal(key, (32, 64, 128), dtype=jnp.float32)
    yc = jax.block_until_ready(reshape_pallas(xc, (-1, 128), copy=True))
    assert jnp.array_equal(yc, jnp.reshape(xc, (32 * 64, 128)))

    print("KERNEL_OK")
</pallas_src>

<mosaic_0001>
module attributes {stable_mosaic.version = 11 : i64} {
  func.func @_copy_kernel(%arg0: i32, %arg1: memref<8x256xf32, #tpu.memory_space<vmem>>, %arg2: memref<8x256xf32, #tpu.memory_space<vmem>>) attributes {dimension_semantics = [#tpu.dimension_semantics<parallel>], iteration_bounds = array<i64: 1>, scalar_prefetch = 0 : i64, scratch_operands = 0 : i64, tpu.core_type = #tpu.core_type<tc>, window_params = [{transform_indices = @transform_0, window_bounds = array<i64: 8, 256>}, {transform_indices = @transform_1, window_bounds = array<i64: 8, 256>}]} {
    %c0 = arith.constant 0 : index
    %c0_0 = arith.constant 0 : index
    %0 = vector.load %arg1[%c0, %c0_0] : memref<8x256xf32, #tpu.memory_space<vmem>>, vector<8x256xf32>
    %c0_1 = arith.constant 0 : index
    %c0_2 = arith.constant 0 : index
    %1 = vector.load %arg2[%c0_1, %c0_2] : memref<8x256xf32, #tpu.memory_space<vmem>>, vector<8x256xf32>
    tpu.vector_store %arg2[%c0_1, %c0_2], %0 {strides = array<i32>} : memref<8x256xf32, #tpu.memory_space<vmem>>, vector<8x256xf32>,
    return
  }
  func.func @transform_0(%arg0: i32) -> (i32, i32) {
    %c0_i32 = arith.constant 0 : i32
    %c0_i32_0 = arith.constant 0 : i32
    return %arg0, %c0_i32 : i32, i32
  }
  func.func @transform_1(%arg0: i32) -> (i32, i32) {
    %c0_i32 = arith.constant 0 : i32
    %c0_i32_0 = arith.constant 0 : i32
    return %arg0, %c0_i32 : i32, i32
  }
}

</mosaic_0001>

<llo_original>
// kernel: tpu_custom_call.1
$region0: #{tpu_custom_call.1}
  #allocation0 [shape = 'u32[]', space=smem, size = 0x4, offset = 0x4, fixed_abs, tag = 'smem constant byte address 0x4 - core index']
  #allocation1 [shape = 'u32[144,128]{1,0:T(1,128)}', space=vmem, size = 0x12000, scoped, tag = 'internal scratch']
  %s0 = inlined_call_operand.hbm [shape: f32[8,256], index: 0, kind: input, shape index: {}]
  %s1 = inlined_call_operand.hbm [shape: f32[8,256], index: 1, kind: output, shape index: {}]
  %s2 = sld [smem:[#allocation0]]
  $region18: #{tpu_custom_call.1} parent=0
    _
  %s4 = ssub.s32 1, %s2
  %s5 = scalar_select 0, %s4, %s2
  $region1: #{tpu_custom_call.1} parent=0
    #allocation2 [shape = 'u8[8192]{0}', space=vmem, size = 0x2000, scoped, tag = 'input window, operand 0, single buffered']
    #allocation3 [shape = 's32[1]{0}', space=sflag, size = 0x4, scoped, tag = 'scoped memory for tpu_custom_call.1']
    #allocation4 [shape = 's32[1]{0}', space=sflag, size = 0x4, scoped, tag = 'scoped memory for tpu_custom_call.1']
    #allocation5 [shape = 'u8[8192]{0}', space=vmem, size = 0x2000, scoped, tag = 'output window, operand 0, single buffered']
    %6 = vsyncpa [#allocation3], 0
    %7 = vsyncpa [#allocation4], 0
    // Predicated region
    $region2: #{tpu_custom_call.1} parent=1 // pred_check
      _
    $region3: #{tpu_custom_call.1} parent=1 // pred_check_branch
      %9 = sbr.rel (0) target = $region5
    $region4: #{tpu_custom_call.1} parent=1 // pred_region
      %s11 = ssub.s32 256, 256
      %12 = vsyncadd [#allocation3], %s11
      %s14 = sshll.u32 [#allocation2], 4
      %s15 = int_to_ptr.vmem [resolvable:$true] %s14
      %17 = dma.hbm_to_vmem [thread:$0]  %s0, 256, %s15, [#allocation3]
    $region5: #{tpu_custom_call.1} parent=1 // pred_fallthru
      _
    // Predicated region
    $region6: #{tpu_custom_call.1} parent=1 // pred_check
      _
    $region7: #{tpu_custom_call.1} parent=1 // pred_check_branch
      %19 = sbr.rel (0) target = $region9
    $region8: #{tpu_custom_call.1} parent=1 // pred_region
      %20 = dma.done [#allocation3], 256
    $region9: #{tpu_custom_call.1} parent=1 // pred_fallthru
      _
    %v21 = vld [vmem:[#allocation2] sm:$0xff]
    %v22 = vld [vmem:[#allocation2 + $0x8] sm:$0xff]
    %23 = vst [vmem:[#allocation5] sm:$0xff] %v21
    %24 = vst [vmem:[#allocation5 + $0x8] sm:$0xff] %v22
    // Predicated region
    $region10: #{tpu_custom_call.1} parent=1 // pred_check
      _
    $region11: #{tpu_custom_call.1} parent=1 // pred_check_branch
      %26 = sbr.rel (0) target = $region13
    $region12: #{tpu_custom_call.1} parent=1 // pred_region
      %s28 = ssub.s32 256, 256
      %29 = vsyncadd [#allocation4], %s28
      %s31 = sshll.u32 [#allocation5], 4
      %s32 = int_to_ptr.vmem [resolvable:$true] %s31
      %34 = dma.vmem_to_hbm [thread:$0]  %s32, 256, %s1, [#allocation4]
    $region13: #{tpu_custom_call.1} parent=1 // pred_fallthru
      _
    // Predicated region
    $region14: #{tpu_custom_call.1} parent=1 // pred_check
      _
    $region15: #{tpu_custom_call.1} parent=1 // pred_check_branch
      %36 = sbr.rel (0) target = $region17
    $region16: #{tpu_custom_call.1} parent=1 // pred_region
      %37 = dma.done [#allocation4], 256
    $region17: #{tpu_custom_call.1} parent=1 // pred_fallthru
      _
    %38 = vsyncpa [#allocation3], 1
    %39 = vsyncpa [#allocation4], 1

</llo_original>
